<compile_context>
chip_gen: v7x
topology: tpu7x:2x2x1
jax: 0.10.0
libtpu: 0.0.40
codegen_flags: <defaults>
</compile_context>

<pallas_src>
import functools
import math

import numpy as np
import jax
import jax.numpy as jnp
from jax.experimental import pallas as pl
from jax.experimental.pallas import tpu as pltpu

_DEFAULT_LIMIT = 1.804

# Candidate lane-dense slab widths (descending); all multiples of 128.
_COL_CANDIDATES = (4096, 2048, 1024, 512, 256, 128)
_FALLBACK_COLS = 1024
# Target per-tile footprint (~2 MiB). 2 operands x 2 buffers -> ~8 MiB VMEM.
_TARGET_TILE_BYTES = 2 * 1024 * 1024
# Below this many elements, pallas_call launch overhead > benefit; let XLA fuse.
_MIN_PALLAS_ELEMS = 1 << 14


def _ceil_div(a: int, b: int) -> int:
    return -(-a // b)


def _lob_kernel(x_ref, o_ref, *, limit, shift):
    # y = limit * sigmoid(x - log(limit - 1)) - 1
    # Load in native dtype, compute in f32, store back in the output dtype.
    x = x_ref[...].astype(jnp.float32)
    sig = jax.nn.sigmoid(x - shift)          # EUP transcendental, no intermediate inf
    o_ref[...] = (limit * sig - 1.0).astype(o_ref.dtype)


def _lob_jax(x, limit, shift):
    # Pure-JAX fallback for tiny / unsupported-dtype inputs (computed in >= f32).
    cdtype = jnp.promote_types(x.dtype, jnp.float32)
    xf = x.astype(cdtype)
    return (limit * jax.nn.sigmoid(xf - shift) - 1.0).astype(x.dtype)


def lob(x: jax.Array, *, limit: float = _DEFAULT_LIMIT, force_pallas: bool = False):
    """Pallas TPU implementation of LOB.forward (elementwise, shape/dtype agnostic)."""
    shift = float(math.log(limit - 1.0))     # baked per trace; any limit > 1 works
    orig_shape = x.shape
    n = int(np.prod(orig_shape))

    if n == 0:
        return x
    dtype = x.dtype
    itemsize = jnp.dtype(dtype).itemsize
    if itemsize > 4:
        # f64 (only with x64 enabled): keep full precision via XLA instead of Pallas.
        return _lob_jax(x, limit, shift)
    if (not force_pallas) and n < _MIN_PALLAS_ELEMS:
        return _lob_jax(x, limit, shift)

    # Sublane packing per dtype width (32-bit vreg rows pack 1/2/4 sub-elements).
    sublane = 8 if itemsize >= 4 else (16 if itemsize == 2 else 32)

    # Lane-dense 2-D slab. Prefer a width that divides n -> zero-copy reshape.
    cols = next((c for c in _COL_CANDIDATES if n % c == 0), None)
    flat = jnp.reshape(x, (-1,))
    if cols is None:
        cols = _FALLBACK_COLS
        rows = _ceil_div(n, cols)
        pad = rows * cols - n
        flat = jnp.pad(flat, (0, pad))
    else:
        rows = n // cols
        pad = 0
    slab = flat.reshape(rows, cols)

    # Row-block sized to ~_TARGET_TILE_BYTES, sublane-aligned; or the full row
    # extent if the whole slab is smaller (full-extent blocks are always legal).
    max_rows = max(sublane, (_TARGET_TILE_BYTES // (cols * itemsize)) // sublane * sublane)
    if rows <= max_rows:
        block_rows = rows
        grid = (1,)
    else:
        block_rows = max_rows
        grid = (_ceil_div(rows, block_rows),)   # ragged last block: masked partial I/O

    kernel = functools.partial(_lob_kernel, limit=float(limit), shift=shift)
    n_total = rows * cols
    cost = pl.CostEstimate(
        flops=4 * n_total,
        transcendentals=n_total,
        bytes_accessed=2 * n_total * itemsize,
    )

    out = pl.pallas_call(
        kernel,
        out_shape=jax.ShapeDtypeStruct((rows, cols), dtype),
        grid_spec=pltpu.PrefetchScalarGridSpec(
            num_scalar_prefetch=0,
            grid=grid,
            in_specs=[pl.BlockSpec((block_rows, cols), lambda i: (i, 0))],
            out_specs=pl.BlockSpec((block_rows, cols), lambda i: (i, 0)),
        ),
        compiler_params=pltpu.CompilerParams(
            dimension_semantics=("parallel",),
            vmem_limit_bytes=32 * 1024 * 1024,
        ),
        cost_estimate=cost,
    )(slab)

    out_flat = out.reshape(-1)
    if pad:
        out_flat = out_flat[:n]
    return out_flat.reshape(orig_shape)


def _lob_ref(x, limit=_DEFAULT_LIMIT):
    # Pure-JAX reference matching the PyTorch forward exactly.
    shift = math.log(limit - 1.0)
    return limit * jax.nn.sigmoid(x - shift) - 1.0


if __name__ == "__main__":
    key = jax.random.PRNGKey(0)
    k1, k2, k3 = jax.random.split(key, 3)

    # 1) Spec-sized NCHW example (2,4,16,16), forced through the Pallas path.
    x_small = jax.random.normal(k1, (2, 4, 16, 16), dtype=jnp.float32)
    y_small = lob(x_small, force_pallas=True)
    jax.block_until_ready(y_small)
    np.testing.assert_allclose(
        np.asarray(y_small), np.asarray(_lob_ref(x_small)), rtol=1e-5, atol=1e-5
    )

    # 2) Larger f32 input: exercises wide lane-dense tiles and a multi-block grid.
    x_big = jax.random.normal(k2, (64, 4, 64, 64), dtype=jnp.float32)
    y_big = lob(x_big)
    jax.block_until_ready(y_big)
    np.testing.assert_allclose(
        np.asarray(y_big), np.asarray(_lob_ref(x_big)), rtol=1e-5, atol=1e-5
    )

    # 3) bf16, ragged size: exercises native-dtype streaming + tail padding path.
    x_bf16 = jax.random.normal(k3, (333, 1000), dtype=jnp.bfloat16)
    y_bf16 = lob(x_bf16)
    jax.block_until_ready(y_bf16)
    np.testing.assert_allclose(
        np.asarray(y_bf16, dtype=np.float32),
        np.asarray(_lob_ref(x_bf16.astype(jnp.float32))),
        rtol=2e-2, atol=2e-2,
    )

    print("KERNEL_OK")
</pallas_src>

<mosaic_0001>
module attributes {stable_mosaic.version = 11 : i64} {
  func.func @_lob_kernel(%arg0: i32, %arg1: memref<1x2048xf32, #tpu.memory_space<vmem>>, %arg2: memref<1x2048xf32, #tpu.memory_space<vmem>>) attributes {dimension_semantics = [#tpu.dimension_semantics<parallel>], iteration_bounds = array<i64: 1>, scalar_prefetch = 0 : i64, scratch_operands = 0 : i64, tpu.core_type = #tpu.core_type<tc>, window_params = [{transform_indices = @transform_0, window_bounds = array<i64: 1, 2048>}, {transform_indices = @transform_1, window_bounds = array<i64: 1, 2048>}]} {
    %c0 = arith.constant 0 : index
    %c0_0 = arith.constant 0 : index
    %0 = vector.load %arg1[%c0, %c0_0] : memref<1x2048xf32, #tpu.memory_space<vmem>>, vector<1x2048xf32>
    %cst = arith.constant -0.21815601 : f32
    %1 = vector.broadcast %cst : f32 to vector<1x2048xf32>
    %2 = arith.subf %0, %1 : vector<1x2048xf32>
    %3 = arith.negf %2 : vector<1x2048xf32>
    %4 = math.exp %3 : vector<1x2048xf32>
    %cst_1 = arith.constant 1.000000e+00 : f32
    %5 = vector.broadcast %cst_1 : f32 to vector<1x2048xf32>
    %6 = arith.addf %5, %4 : vector<1x2048xf32>
    %7 = arith.divf %5, %6 : vector<1x2048xf32>
    %cst_2 = arith.constant 1.804000e+00 : f32
    %8 = vector.broadcast %cst_2 : f32 to vector<1x2048xf32>
    %9 = arith.mulf %8, %7 : vector<1x2048xf32>
    %cst_3 = arith.constant 1.000000e+00 : f32
    %10 = vector.broadcast %cst_3 : f32 to vector<1x2048xf32>
    %11 = arith.subf %9, %10 : vector<1x2048xf32>
    %c0_4 = arith.constant 0 : index
    %c0_5 = arith.constant 0 : index
    %12 = vector.load %arg2[%c0_4, %c0_5] : memref<1x2048xf32, #tpu.memory_space<vmem>>, vector<1x2048xf32>
    tpu.vector_store %arg2[%c0_4, %c0_5], %11 {strides = array<i32>} : memref<1x2048xf32, #tpu.memory_space<vmem>>, vector<1x2048xf32>,
    return
  }
  func.func @transform_0(%arg0: i32) -> (i32, i32) {
    %c0_i32 = arith.constant 0 : i32
    %c0_i32_0 = arith.constant 0 : i32
    return %arg0, %c0_i32 : i32, i32
  }
  func.func @transform_1(%arg0: i32) -> (i32, i32) {
    %c0_i32 = arith.constant 0 : i32
    %c0_i32_0 = arith.constant 0 : i32
    return %arg0, %c0_i32 : i32, i32
  }
}

</mosaic_0001>

<llo_original>
// kernel: tpu_custom_call.1
$region0: #{tpu_custom_call.1}
  #allocation0 [shape = 'u32[]', space=smem, size = 0x4, offset = 0x4, fixed_abs, tag = 'smem constant byte address 0x4 - core index']
  #allocation1 [shape = 'u32[144,128]{1,0:T(1,128)}', space=vmem, size = 0x12000, scoped, tag = 'internal scratch']
  %s0 = inlined_call_operand.hbm [shape: f32[1,2048], index: 0, kind: input, shape index: {}]
  %s1 = inlined_call_operand.hbm [shape: f32[1,2048], index: 1, kind: output, shape index: {}]
  %s2 = sld [smem:[#allocation0]]
  $region18: #{tpu_custom_call.1} parent=0
    _
  %s4 = ssub.s32 1, %s2
  %s5 = scalar_select 0, %s4, %s2
  $region1: #{tpu_custom_call.1} parent=0
    #allocation2 [shape = 'u8[8192]{0}', space=vmem, size = 0x2000, scoped, tag = 'input window, operand 0, single buffered']
    #allocation3 [shape = 's32[1]{0}', space=sflag, size = 0x4, scoped, tag = 'scoped memory for tpu_custom_call.1']
    #allocation4 [shape = 's32[1]{0}', space=sflag, size = 0x4, scoped, tag = 'scoped memory for tpu_custom_call.1']
    #allocation5 [shape = 'u8[8192]{0}', space=vmem, size = 0x2000, scoped, tag = 'output window, operand 0, single buffered']
    %6 = vsyncpa [#allocation3], 0
    %7 = vsyncpa [#allocation4], 0
    // Predicated region
    $region2: #{tpu_custom_call.1} parent=1 // pred_check
      _
    $region3: #{tpu_custom_call.1} parent=1 // pred_check_branch
      %9 = sbr.rel (0) target = $region5
    $region4: #{tpu_custom_call.1} parent=1 // pred_region
      %s11 = ssub.s32 256, 256
      %12 = vsyncadd [#allocation3], %s11
      %s14 = sshll.u32 [#allocation2], 4
      %s15 = int_to_ptr.vmem [resolvable:$true] %s14
      %17 = dma.hbm_to_vmem [thread:$0]  %s0, 256, %s15, [#allocation3]
    $region5: #{tpu_custom_call.1} parent=1 // pred_fallthru
      _
    // Predicated region
    $region6: #{tpu_custom_call.1} parent=1 // pred_check
      _
    $region7: #{tpu_custom_call.1} parent=1 // pred_check_branch
      %19 = sbr.rel (0) target = $region9
    $region8: #{tpu_custom_call.1} parent=1 // pred_region
      %20 = dma.done [#allocation3], 256
    $region9: #{tpu_custom_call.1} parent=1 // pred_fallthru
      _
    %v21 = vld [vmem:[#allocation2] sm:$0xff]
    %v22 = vld [vmem:[#allocation2 + $0x8] sm:$0xff]
    %v23 = vsub.f32 %v21, -0.21815601
    %v24 = vsub.f32 %v22, -0.21815601
    %v25 = vxor.u32 %v23, 2147483648
    %v26 = vxor.u32 %v24, 2147483648
    %v27 = vmul.f32 %v25, 1.442695
    %v28 = vpow.pop %v27
    %v29 = vmul.f32 %v26, 1.442695
    %v30 = vpow.pop %v29
    %v31 = vadd.f32 %v28, 1.0
    %v32 = vadd.f32 %v30, 1.0
    %v33 = vrcp.pop %v31
    %v34 = vmul.f32 1.0, %v33
    %v35 = vrcp.pop %v32
    %v36 = vmul.f32 1.0, %v35
    %v37 = vmul.f32 %v34, 1.804
    %v38 = vmul.f32 %v36, 1.804
    %v39 = vsub.f32 %v37, 1.0
    %v40 = vsub.f32 %v38, 1.0
    %41 = vst [vmem:[#allocation5] sm:$0xff] %v39
    %42 = vst [vmem:[#allocation5 + $0x8] sm:$0xff] %v40
    // Predicated region
    $region10: #{tpu_custom_call.1} parent=1 // pred_check
      _
    $region11: #{tpu_custom_call.1} parent=1 // pred_check_branch
      %44 = sbr.rel (0) target = $region13
    $region12: #{tpu_custom_call.1} parent=1 // pred_region
      %s46 = ssub.s32 256, 256
      %47 = vsyncadd [#allocation4], %s46
      %s49 = sshll.u32 [#allocation5], 4
      %s50 = int_to_ptr.vmem [resolvable:$true] %s49
      %52 = dma.vmem_to_hbm [thread:$0]  %s50, 256, %s1, [#allocation4]
    $region13: #{tpu_custom_call.1} parent=1 // pred_fallthru
      _
    // Predicated region
    $region14: #{tpu_custom_call.1} parent=1 // pred_check
      _
    $region15: #{tpu_custom_call.1} parent=1 // pred_check_branch
      %54 = sbr.rel (0) target = $region17
    $region16: #{tpu_custom_call.1} parent=1 // pred_region
      %55 = dma.done [#allocation4], 256
    $region17: #{tpu_custom_call.1} parent=1 // pred_fallthru
      _
    %56 = vsyncpa [#allocation3], 1
    %57 = vsyncpa [#allocation4], 1

</llo_original>
